<compile_context>
chip_gen: v7x
topology: tpu7x:2x2x1
jax: 0.10.0
libtpu: 0.0.40
codegen_flags: <defaults>
</compile_context>

<pallas_src>
import functools
import math

import jax
import jax.numpy as jnp
from jax.experimental import pallas as pl
from jax.experimental.pallas import tpu as pltpu

_LANES = 128
_SUBLANES = 8
_PAD_SENTINEL = 1e30  # sigma*sentinel stays finite in f32; exp(-|...|) -> exactly 0


def _soft_histogram_kernel(x_ref, out_ref, *, bins, sigma, sigma_centers,
                           apb, bma, sub, reduce_axis):
    """Accumulate per-bin (sub, 128) partial sums into a resident output block.

    x_ref:   (1, tile_rows, 128) VMEM block of raw inputs (sublane-dense).
    out_ref: (1, bins, sub, 128) resident accumulator (same block every step).
    """
    k = pl.program_id(reduce_axis)

    @pl.when(k == 0)
    def _():
        out_ref[...] = jnp.zeros_like(out_ref)

    tile_rows = x_ref.shape[1]
    n_chunks = tile_rows // sub

    sigma_f = jnp.float32(sigma)
    apb_f = jnp.float32(apb)
    bma_f = jnp.float32(bma)

    def body(i, accs):
        row = pl.multiple_of(i * sub, sub)
        # One sigma multiply per element, hoisted out of the bin loop.
        sx = x_ref[0, pl.ds(row, sub), :] * sigma_f               # (sub, 128)
        new = []
        for bi in range(bins):                                    # static unroll
            # sigmoid(s(d+h)) - sigmoid(s(d-h)) == bma*e / (1 + apb*e + e^2),
            # e = exp(-|s*d|)  (symmetric in d, e in (0,1], no clamp needed).
            t = jnp.abs(sx - jnp.float32(sigma_centers[bi]))
            e = jnp.exp(-t)                                       # EUP
            denom = 1.0 + apb_f * e + e * e                       # in [1, 2+apb]
            r = pl.reciprocal(denom, approx=True)                 # EUP approx
            r = r * (2.0 - denom * r)                             # Newton -> f32 acc.
            new.append(accs[bi] + (bma_f * e) * r)
        return tuple(new)

    accs0 = tuple(jnp.zeros((sub, _LANES), jnp.float32) for _ in range(bins))
    accs = jax.lax.fori_loop(0, n_chunks, body, accs0)

    for bi in range(bins):                                        # static unroll
        out_ref[0, bi] += accs[bi]


def _default_num_parallel():
    # v7x has 2 TensorCores per chip (megacore); v5e/v6e have 1, where a size-2
    # parallel axis only adds padding + grid overhead.
    try:
        kind = jax.devices()[0].device_kind.lower()
    except Exception:
        return 1
    return 2 if "v7" in kind else 1


def soft_histogram(x, *, bins, vmin, vmax, sigma, tile_n=262144, num_parallel=None):
    """Pallas SoftHistogram forward. x: any-shape float array. Returns (bins,) f32."""
    if num_parallel is None:
        num_parallel = _default_num_parallel()

    x = jnp.asarray(x, jnp.float32).reshape(-1)
    n = x.shape[0]
    delta = float(vmax - vmin) / float(bins)

    # --- sublane-dense tiling: rows of 128 lanes, tile_rows % 8 == 0 ---------
    rows_needed = max(1, -(-n // _LANES))                          # cdiv
    rows_per_p = -(-rows_needed // num_parallel)
    rows_per_p = max(_SUBLANES, -(-rows_per_p // _SUBLANES) * _SUBLANES)
    tile_rows_cap = max(_SUBLANES, (tile_n // _LANES) // _SUBLANES * _SUBLANES)
    tile_rows = min(tile_rows_cap, rows_per_p)
    rows_per_p = -(-rows_per_p // tile_rows) * tile_rows
    steps = rows_per_p // tile_rows

    n_pad = num_parallel * rows_per_p * _LANES
    if n_pad != n:
        # Huge finite sentinel: exp(-|sigma*(sentinel - c)|) underflows to
        # exactly 0 for every bin -> padded elements add zero mass with no
        # in-kernel masking. Real NaNs in x still propagate (like the ref).
        xp = jnp.full((n_pad,), _PAD_SENTINEL, dtype=jnp.float32).at[:n].set(x)
    else:
        xp = x
    x3 = xp.reshape(num_parallel, rows_per_p, _LANES)

    # Compile-time constants of the collapsed two-sigmoid formula.
    half = 0.5 * delta
    a = math.exp(-float(sigma) * half)
    b = 1.0 / a
    sigma_centers = tuple(float(sigma) * (float(vmin) + delta * (bi + 0.5))
                          for bi in range(bins))

    if num_parallel == 1:
        grid = (steps,)
        in_specs = [pl.BlockSpec((1, tile_rows, _LANES), lambda k: (0, k, 0))]
        out_specs = pl.BlockSpec((1, bins, _SUBLANES, _LANES),
                                 lambda k: (0, 0, 0, 0))
        dims = ("arbitrary",)
        reduce_axis = 0
    else:
        grid = (num_parallel, steps)
        in_specs = [pl.BlockSpec((1, tile_rows, _LANES), lambda p, k: (p, k, 0))]
        out_specs = pl.BlockSpec((1, bins, _SUBLANES, _LANES),
                                 lambda p, k: (p, 0, 0, 0))
        dims = ("parallel", "arbitrary")
        reduce_axis = 1

    kernel = functools.partial(
        _soft_histogram_kernel,
        bins=bins,
        sigma=float(sigma),
        sigma_centers=sigma_centers,
        apb=a + b,
        bma=b - a,
        sub=_SUBLANES,
        reduce_axis=reduce_axis,
    )

    partials = pl.pallas_call(
        kernel,
        out_shape=jax.ShapeDtypeStruct(
            (num_parallel, bins, _SUBLANES, _LANES), jnp.float32),
        grid_spec=pltpu.PrefetchScalarGridSpec(
            num_scalar_prefetch=0,
            grid=grid,
            in_specs=in_specs,
            out_specs=out_specs,
        ),
        compiler_params=pltpu.CompilerParams(dimension_semantics=dims),
    )(x3)

    # TODO(synk): for >~1e7 elements per lane column, split the f32 running sum
    # (per-step partials combined outside) to bound accumulation drift.
    y = jnp.sum(partials, axis=(0, 2, 3))          # tiny (bins,) reduce in JAX
    return y / jnp.sum(y)


def _soft_histogram_ref(x, *, bins, vmin, vmax, sigma):
    """Pure-JAX reference mirroring the PyTorch module exactly (two sigmoids)."""
    x = jnp.asarray(x, jnp.float32).reshape(-1)
    delta = float(vmax - vmin) / float(bins)
    centers = float(vmin) + delta * (jnp.arange(bins, dtype=jnp.float32) + 0.5)
    d = x[None, :] - centers[:, None]
    w = jax.nn.sigmoid(sigma * (d + delta / 2)) - jax.nn.sigmoid(sigma * (d - delta / 2))
    y = w.sum(axis=1)
    return y / jnp.sum(y)


if __name__ == "__main__":
    # Module __init__ args
    BINS, VMIN, VMAX, SIGMA = 16, 0.0, 1.0, 100.0

    # Deterministic input: small NCHW image flattened to the 1-D vector the
    # module's forward expects.
    key = jax.random.PRNGKey(0)
    img = jax.random.uniform(key, (2, 4, 16, 16), dtype=jnp.float32)   # NCHW
    x = img.reshape(-1)                                                # N = 2048

    out = jax.block_until_ready(
        soft_histogram(x, bins=BINS, vmin=VMIN, vmax=VMAX, sigma=SIGMA))
    ref = _soft_histogram_ref(x, bins=BINS, vmin=VMIN, vmax=VMAX, sigma=SIGMA)
    assert out.shape == (BINS,)
    assert jnp.allclose(out, ref, atol=1e-5, rtol=1e-5), (out, ref)
    assert jnp.allclose(jnp.sum(out), 1.0, atol=1e-5)

    # Second case: length not a tile multiple -> exercises sentinel padding.
    x2 = x[:2000]
    out2 = jax.block_until_ready(
        soft_histogram(x2, bins=BINS, vmin=VMIN, vmax=VMAX, sigma=SIGMA))
    ref2 = _soft_histogram_ref(x2, bins=BINS, vmin=VMIN, vmax=VMAX, sigma=SIGMA)
    assert jnp.allclose(out2, ref2, atol=1e-5, rtol=1e-5), (out2, ref2)

    print("KERNEL_OK")
</pallas_src>

<mosaic_0001>
module attributes {stable_mosaic.version = 11 : i64} {
  func.func @_soft_histogram_kernel(%arg0: i32, %arg1: memref<1x16x128xf32, #tpu.memory_space<vmem>>, %arg2: memref<1x16x8x128xf32, #tpu.memory_space<vmem>>) attributes {dimension_semantics = [#tpu.dimension_semantics<arbitrary>], iteration_bounds = array<i64: 1>, scalar_prefetch = 0 : i64, scratch_operands = 0 : i64, tpu.core_type = #tpu.core_type<tc>, window_params = [{transform_indices = @transform_0, window_bounds = array<i64: 1, 16, 128>}, {pipeline_mode = #tpu.pipeline_mode<synchronous>, transform_indices = @transform_1, window_bounds = array<i64: 1, 16, 8, 128>}]} {
    %c0_i32 = arith.constant 0 : i32
    %0 = arith.cmpi eq, %arg0, %c0_i32 : i32
    %1 = arith.extui %0 : i1 to i32
    %c0_i32_0 = arith.constant 0 : i32
    %2 = arith.cmpi ne, %1, %c0_i32_0 : i32
    scf.if %2 {
      %cst_133 = arith.constant 0.000000e+00 : f32
      %117 = vector.broadcast %cst_133 : f32 to vector<1x16x8x128xf32>
      %c0_134 = arith.constant 0 : index
      %c0_135 = arith.constant 0 : index
      %c0_136 = arith.constant 0 : index
      %c0_137 = arith.constant 0 : index
      %118 = vector.load %arg2[%c0_134, %c0_135, %c0_136, %c0_137] : memref<1x16x8x128xf32, #tpu.memory_space<vmem>>, vector<1x16x8x128xf32>
      tpu.vector_store %arg2[%c0_134, %c0_135, %c0_136, %c0_137], %117 {strides = array<i32>} : memref<1x16x8x128xf32, #tpu.memory_space<vmem>>, vector<1x16x8x128xf32>,
    } else {
    }
    %cst = arith.constant 0.000000e+00 : f32
    %3 = vector.broadcast %cst : f32 to vector<8x128xf32>
    %cst_1 = arith.constant 0.000000e+00 : f32
    %4 = vector.broadcast %cst_1 : f32 to vector<8x128xf32>
    %cst_2 = arith.constant 0.000000e+00 : f32
    %5 = vector.broadcast %cst_2 : f32 to vector<8x128xf32>
    %cst_3 = arith.constant 0.000000e+00 : f32
    %6 = vector.broadcast %cst_3 : f32 to vector<8x128xf32>
    %cst_4 = arith.constant 0.000000e+00 : f32
    %7 = vector.broadcast %cst_4 : f32 to vector<8x128xf32>
    %cst_5 = arith.constant 0.000000e+00 : f32
    %8 = vector.broadcast %cst_5 : f32 to vector<8x128xf32>
    %cst_6 = arith.constant 0.000000e+00 : f32
    %9 = vector.broadcast %cst_6 : f32 to vector<8x128xf32>
    %cst_7 = arith.constant 0.000000e+00 : f32
    %10 = vector.broadcast %cst_7 : f32 to vector<8x128xf32>
    %cst_8 = arith.constant 0.000000e+00 : f32
    %11 = vector.broadcast %cst_8 : f32 to vector<8x128xf32>
    %cst_9 = arith.constant 0.000000e+00 : f32
    %12 = vector.broadcast %cst_9 : f32 to vector<8x128xf32>
    %cst_10 = arith.constant 0.000000e+00 : f32
    %13 = vector.broadcast %cst_10 : f32 to vector<8x128xf32>
    %cst_11 = arith.constant 0.000000e+00 : f32
    %14 = vector.broadcast %cst_11 : f32 to vector<8x128xf32>
    %cst_12 = arith.constant 0.000000e+00 : f32
    %15 = vector.broadcast %cst_12 : f32 to vector<8x128xf32>
    %cst_13 = arith.constant 0.000000e+00 : f32
    %16 = vector.broadcast %cst_13 : f32 to vector<8x128xf32>
    %cst_14 = arith.constant 0.000000e+00 : f32
    %17 = vector.broadcast %cst_14 : f32 to vector<8x128xf32>
    %cst_15 = arith.constant 0.000000e+00 : f32
    %18 = vector.broadcast %cst_15 : f32 to vector<8x128xf32>
    %cst_16 = arith.constant 1.000000e+02 : f32
    %cst_17 = arith.constant 22.8038311 : f32
    %cst_18 = arith.constant 22.7159576 : f32
    %c0_i32_19 = arith.constant 0 : i32
    %c2_i32 = arith.constant 2 : i32
    %19 = arith.addi %c0_i32_19, %c2_i32 : i32
    %c1_i32 = arith.constant 1 : i32
    %20:16 = scf.for %arg3 = %c0_i32_19 to %19 step %c1_i32 iter_args(%arg4 = %3, %arg5 = %4, %arg6 = %5, %arg7 = %6, %arg8 = %7, %arg9 = %8, %arg10 = %9, %arg11 = %10, %arg12 = %11, %arg13 = %12, %arg14 = %13, %arg15 = %14, %arg16 = %15, %arg17 = %16, %arg18 = %17, %arg19 = %18) -> (vector<8x128xf32>, vector<8x128xf32>, vector<8x128xf32>, vector<8x128xf32>, vector<8x128xf32>, vector<8x128xf32>, vector<8x128xf32>, vector<8x128xf32>, vector<8x128xf32>, vector<8x128xf32>, vector<8x128xf32>, vector<8x128xf32>, vector<8x128xf32>, vector<8x128xf32>, vector<8x128xf32>, vector<8x128xf32>)  : i32 {
      %c8_i32 = arith.constant 8 : i32
      %117 = arith.muli %arg3, %c8_i32 : i32
      %118 = tpu.assume_multiple %117, 8 : i32
      %c0_133 = arith.constant 0 : index
      %119 = arith.index_cast %118 : i32 to index
      %c0_134 = arith.constant 0 : index
      %120 = vector.load %arg1[%c0_133, %119, %c0_134] : memref<1x16x128xf32, #tpu.memory_space<vmem>>, vector<1x8x128xf32>
      %121 = vector.shape_cast %120 : vector<1x8x128xf32> to vector<8x128xf32>
      %122 = vector.broadcast %cst_16 : f32 to vector<8x128xf32>
      %123 = arith.mulf %121, %122 : vector<8x128xf32>
      %cst_135 = arith.constant 3.125000e+00 : f32
      %124 = vector.broadcast %cst_135 : f32 to vector<8x128xf32>
      %125 = arith.subf %123, %124 : vector<8x128xf32>
      %126 = math.absf %125 : vector<8x128xf32>
      %cst_136 = arith.constant 0.000000e+00 : f32
      %127 = vector.broadcast %cst_136 : f32 to vector<8x128xf32>
      %128 = arith.subf %127, %126 : vector<8x128xf32>
      %129 = math.exp %128 : vector<8x128xf32>
      %130 = vector.broadcast %cst_17 : f32 to vector<8x128xf32>
      %131 = arith.mulf %130, %129 : vector<8x128xf32>
      %cst_137 = arith.constant 1.000000e+00 : f32
      %132 = vector.broadcast %cst_137 : f32 to vector<8x128xf32>
      %133 = arith.addf %132, %131 : vector<8x128xf32>
      %134 = arith.mulf %129, %129 : vector<8x128xf32>
      %135 = arith.addf %133, %134 : vector<8x128xf32>
      %136 = tpu.reciprocal %135 {approx = true} : vector<8x128xf32> -> vector<8x128xf32>
      %137 = arith.mulf %135, %136 : vector<8x128xf32>
      %cst_138 = arith.constant 2.000000e+00 : f32
      %138 = vector.broadcast %cst_138 : f32 to vector<8x128xf32>
      %139 = arith.subf %138, %137 : vector<8x128xf32>
      %140 = arith.mulf %136, %139 : vector<8x128xf32>
      %141 = vector.broadcast %cst_18 : f32 to vector<8x128xf32>
      %142 = arith.mulf %141, %129 : vector<8x128xf32>
      %143 = arith.mulf %142, %140 : vector<8x128xf32>
      %144 = arith.addf %arg4, %143 : vector<8x128xf32>
      %cst_139 = arith.constant 9.375000e+00 : f32
      %145 = vector.broadcast %cst_139 : f32 to vector<8x128xf32>
      %146 = arith.subf %123, %145 : vector<8x128xf32>
      %147 = math.absf %146 : vector<8x128xf32>
      %cst_140 = arith.constant 0.000000e+00 : f32
      %148 = vector.broadcast %cst_140 : f32 to vector<8x128xf32>
      %149 = arith.subf %148, %147 : vector<8x128xf32>
      %150 = math.exp %149 : vector<8x128xf32>
      %151 = vector.broadcast %cst_17 : f32 to vector<8x128xf32>
      %152 = arith.mulf %151, %150 : vector<8x128xf32>
      %cst_141 = arith.constant 1.000000e+00 : f32
      %153 = vector.broadcast %cst_141 : f32 to vector<8x128xf32>
      %154 = arith.addf %153, %152 : vector<8x128xf32>
      %155 = arith.mulf %150, %150 : vector<8x128xf32>
      %156 = arith.addf %154, %155 : vector<8x128xf32>
      %157 = tpu.reciprocal %156 {approx = true} : vector<8x128xf32> -> vector<8x128xf32>
      %158 = arith.mulf %156, %157 : vector<8x128xf32>
      %cst_142 = arith.constant 2.000000e+00 : f32
      %159 = vector.broadcast %cst_142 : f32 to vector<8x128xf32>
      %160 = arith.subf %159, %158 : vector<8x128xf32>
      %161 = arith.mulf %157, %160 : vector<8x128xf32>
      %162 = vector.broadcast %cst_18 : f32 to vector<8x128xf32>
      %163 = arith.mulf %162, %150 : vector<8x128xf32>
      %164 = arith.mulf %163, %161 : vector<8x128xf32>
      %165 = arith.addf %arg5, %164 : vector<8x128xf32>
      %cst_143 = arith.constant 1.562500e+01 : f32
      %166 = vector.broadcast %cst_143 : f32 to vector<8x128xf32>
      %167 = arith.subf %123, %166 : vector<8x128xf32>
      %168 = math.absf %167 : vector<8x128xf32>
      %cst_144 = arith.constant 0.000000e+00 : f32
      %169 = vector.broadcast %cst_144 : f32 to vector<8x128xf32>
      %170 = arith.subf %169, %168 : vector<8x128xf32>
      %171 = math.exp %170 : vector<8x128xf32>
      %172 = vector.broadcast %cst_17 : f32 to vector<8x128xf32>
      %173 = arith.mulf %172, %171 : vector<8x128xf32>
      %cst_145 = arith.constant 1.000000e+00 : f32
      %174 = vector.broadcast %cst_145 : f32 to vector<8x128xf32>
      %175 = arith.addf %174, %173 : vector<8x128xf32>
      %176 = arith.mulf %171, %171 : vector<8x128xf32>
      %177 = arith.addf %175, %176 : vector<8x128xf32>
      %178 = tpu.reciprocal %177 {approx = true} : vector<8x128xf32> -> vector<8x128xf32>
      %179 = arith.mulf %177, %178 : vector<8x128xf32>
      %cst_146 = arith.constant 2.000000e+00 : f32
      %180 = vector.broadcast %cst_146 : f32 to vector<8x128xf32>
      %181 = arith.subf %180, %179 : vector<8x128xf32>
      %182 = arith.mulf %178, %181 : vector<8x128xf32>
      %183 = vector.broadcast %cst_18 : f32 to vector<8x128xf32>
      %184 = arith.mulf %183, %171 : vector<8x128xf32>
      %185 = arith.mulf %184, %182 : vector<8x128xf32>
      %186 = arith.addf %arg6, %185 : vector<8x128xf32>
      %cst_147 = arith.constant 2.187500e+01 : f32
      %187 = vector.broadcast %cst_147 : f32 to vector<8x128xf32>
      %188 = arith.subf %123, %187 : vector<8x128xf32>
      %189 = math.absf %188 : vector<8x128xf32>
      %cst_148 = arith.constant 0.000000e+00 : f32
      %190 = vector.broadcast %cst_148 : f32 to vector<8x128xf32>
      %191 = arith.subf %190, %189 : vector<8x128xf32>
      %192 = math.exp %191 : vector<8x128xf32>
      %193 = vector.broadcast %cst_17 : f32 to vector<8x128xf32>
      %194 = arith.mulf %193, %192 : vector<8x128xf32>
      %cst_149 = arith.constant 1.000000e+00 : f32
      %195 = vector.broadcast %cst_149 : f32 to vector<8x128xf32>
      %196 = arith.addf %195, %194 : vector<8x128xf32>
      %197 = arith.mulf %192, %192 : vector<8x128xf32>
      %198 = arith.addf %196, %197 : vector<8x128xf32>
      %199 = tpu.reciprocal %198 {approx = true} : vector<8x128xf32> -> vector<8x128xf32>
      %200 = arith.mulf %198, %199 : vector<8x128xf32>
      %cst_150 = arith.constant 2.000000e+00 : f32
      %201 = vector.broadcast %cst_150 : f32 to vector<8x128xf32>
      %202 = arith.subf %201, %200 : vector<8x128xf32>
      %203 = arith.mulf %199, %202 : vector<8x128xf32>
      %204 = vector.broadcast %cst_18 : f32 to vector<8x128xf32>
      %205 = arith.mulf %204, %192 : vector<8x128xf32>
      %206 = arith.mulf %205, %203 : vector<8x128xf32>
      %207 = arith.addf %arg7, %206 : vector<8x128xf32>
      %cst_151 = arith.constant 2.812500e+01 : f32
      %208 = vector.broadcast %cst_151 : f32 to vector<8x128xf32>
      %209 = arith.subf %123, %208 : vector<8x128xf32>
      %210 = math.absf %209 : vector<8x128xf32>
      %cst_152 = arith.constant 0.000000e+00 : f32
      %211 = vector.broadcast %cst_152 : f32 to vector<8x128xf32>
      %212 = arith.subf %211, %210 : vector<8x128xf32>
      %213 = math.exp %212 : vector<8x128xf32>
      %214 = vector.broadcast %cst_17 : f32 to vector<8x128xf32>
      %215 = arith.mulf %214, %213 : vector<8x128xf32>
      %cst_153 = arith.constant 1.000000e+00 : f32
      %216 = vector.broadcast %cst_153 : f32 to vector<8x128xf32>
      %217 = arith.addf %216, %215 : vector<8x128xf32>
      %218 = arith.mulf %213, %213 : vector<8x128xf32>
      %219 = arith.addf %217, %218 : vector<8x128xf32>
      %220 = tpu.reciprocal %219 {approx = true} : vector<8x128xf32> -> vector<8x128xf32>
      %221 = arith.mulf %219, %220 : vector<8x128xf32>
      %cst_154 = arith.constant 2.000000e+00 : f32
      %222 = vector.broadcast %cst_154 : f32 to vector<8x128xf32>
      %223 = arith.subf %222, %221 : vector<8x128xf32>
      %224 = arith.mulf %220, %223 : vector<8x128xf32>
      %225 = vector.broadcast %cst_18 : f32 to vector<8x128xf32>
      %226 = arith.mulf %225, %213 : vector<8x128xf32>
      %227 = arith.mulf %226, %224 : vector<8x128xf32>
      %228 = arith.addf %arg8, %227 : vector<8x128xf32>
      %cst_155 = arith.constant 3.437500e+01 : f32
      %229 = vector.broadcast %cst_155 : f32 to vector<8x128xf32>
      %230 = arith.subf %123, %229 : vector<8x128xf32>
      %231 = math.absf %230 : vector<8x128xf32>
      %cst_156 = arith.constant 0.000000e+00 : f32
      %232 = vector.broadcast %cst_156 : f32 to vector<8x128xf32>
      %233 = arith.subf %232, %231 : vector<8x128xf32>
      %234 = math.exp %233 : vector<8x128xf32>
      %235 = vector.broadcast %cst_17 : f32 to vector<8x128xf32>
      %236 = arith.mulf %235, %234 : vector<8x128xf32>
      %cst_157 = arith.constant 1.000000e+00 : f32
      %237 = vector.broadcast %cst_157 : f32 to vector<8x128xf32>
      %238 = arith.addf %237, %236 : vector<8x128xf32>
      %239 = arith.mulf %234, %234 : vector<8x128xf32>
      %240 = arith.addf %238, %239 : vector<8x128xf32>
      %241 = tpu.reciprocal %240 {approx = true} : vector<8x128xf32> -> vector<8x128xf32>
      %242 = arith.mulf %240, %241 : vector<8x128xf32>
      %cst_158 = arith.constant 2.000000e+00 : f32
      %243 = vector.broadcast %cst_158 : f32 to vector<8x128xf32>
      %244 = arith.subf %243, %242 : vector<8x128xf32>
      %245 = arith.mulf %241, %244 : vector<8x128xf32>
      %246 = vector.broadcast %cst_18 : f32 to vector<8x128xf32>
      %247 = arith.mulf %246, %234 : vector<8x128xf32>
      %248 = arith.mulf %247, %245 : vector<8x128xf32>
      %249 = arith.addf %arg9, %248 : vector<8x128xf32>
      %cst_159 = arith.constant 4.062500e+01 : f32
      %250 = vector.broadcast %cst_159 : f32 to vector<8x128xf32>
      %251 = arith.subf %123, %250 : vector<8x128xf32>
      %252 = math.absf %251 : vector<8x128xf32>
      %cst_160 = arith.constant 0.000000e+00 : f32
      %253 = vector.broadcast %cst_160 : f32 to vector<8x128xf32>
      %254 = arith.subf %253, %252 : vector<8x128xf32>
      %255 = math.exp %254 : vector<8x128xf32>
      %256 = vector.broadcast %cst_17 : f32 to vector<8x128xf32>
      %257 = arith.mulf %256, %255 : vector<8x128xf32>
      %cst_161 = arith.constant 1.000000e+00 : f32
      %258 = vector.broadcast %cst_161 : f32 to vector<8x128xf32>
      %259 = arith.addf %258, %257 : vector<8x128xf32>
      %260 = arith.mulf %255, %255 : vector<8x128xf32>
      %261 = arith.addf %259, %260 : vector<8x128xf32>
      %262 = tpu.reciprocal %261 {approx = true} : vector<8x128xf32> -> vector<8x128xf32>
      %263 = arith.mulf %261, %262 : vector<8x128xf32>
      %cst_162 = arith.constant 2.000000e+00 : f32
      %264 = vector.broadcast %cst_162 : f32 to vector<8x128xf32>
      %265 = arith.subf %264, %263 : vector<8x128xf32>
      %266 = arith.mulf %262, %265 : vector<8x128xf32>
      %267 = vector.broadcast %cst_18 : f32 to vector<8x128xf32>
      %268 = arith.mulf %267, %255 : vector<8x128xf32>
      %269 = arith.mulf %268, %266 : vector<8x128xf32>
      %270 = arith.addf %arg10, %269 : vector<8x128xf32>
      %cst_163 = arith.constant 4.687500e+01 : f32
      %271 = vector.broadcast %cst_163 : f32 to vector<8x128xf32>
      %272 = arith.subf %123, %271 : vector<8x128xf32>
      %273 = math.absf %272 : vector<8x128xf32>
      %cst_164 = arith.constant 0.000000e+00 : f32
      %274 = vector.broadcast %cst_164 : f32 to vector<8x128xf32>
      %275 = arith.subf %274, %273 : vector<8x128xf32>
      %276 = math.exp %275 : vector<8x128xf32>
      %277 = vector.broadcast %cst_17 : f32 to vector<8x128xf32>
      %278 = arith.mulf %277, %276 : vector<8x128xf32>
      %cst_165 = arith.constant 1.000000e+00 : f32
      %279 = vector.broadcast %cst_165 : f32 to vector<8x128xf32>
      %280 = arith.addf %279, %278 : vector<8x128xf32>
      %281 = arith.mulf %276, %276 : vector<8x128xf32>
      %282 = arith.addf %280, %281 : vector<8x128xf32>
      %283 = tpu.reciprocal %282 {approx = true} : vector<8x128xf32> -> vector<8x128xf32>
      %284 = arith.mulf %282, %283 : vector<8x128xf32>
      %cst_166 = arith.constant 2.000000e+00 : f32
      %285 = vector.broadcast %cst_166 : f32 to vector<8x128xf32>
      %286 = arith.subf %285, %284 : vector<8x128xf32>
      %287 = arith.mulf %283, %286 : vector<8x128xf32>
      %288 = vector.broadcast %cst_18 : f32 to vector<8x128xf32>
      %289 = arith.mulf %288, %276 : vector<8x128xf32>
      %290 = arith.mulf %289, %287 : vector<8x128xf32>
      %291 = arith.addf %arg11, %290 : vector<8x128xf32>
      %cst_167 = arith.constant 5.312500e+01 : f32
      %292 = vector.broadcast %cst_167 : f32 to vector<8x128xf32>
      %293 = arith.subf %123, %292 : vector<8x128xf32>
      %294 = math.absf %293 : vector<8x128xf32>
      %cst_168 = arith.constant 0.000000e+00 : f32
      %295 = vector.broadcast %cst_168 : f32 to vector<8x128xf32>
      %296 = arith.subf %295, %294 : vector<8x128xf32>
      %297 = math.exp %296 : vector<8x128xf32>
      %298 = vector.broadcast %cst_17 : f32 to vector<8x128xf32>
      %299 = arith.mulf %298, %297 : vector<8x128xf32>
      %cst_169 = arith.constant 1.000000e+00 : f32
      %300 = vector.broadcast %cst_169 : f32 to vector<8x128xf32>
      %301 = arith.addf %300, %299 : vector<8x128xf32>
      %302 = arith.mulf %297, %297 : vector<8x128xf32>
      %303 = arith.addf %301, %302 : vector<8x128xf32>
      %304 = tpu.reciprocal %303 {approx = true} : vector<8x128xf32> -> vector<8x128xf32>
      %305 = arith.mulf %303, %304 : vector<8x128xf32>
      %cst_170 = arith.constant 2.000000e+00 : f32
      %306 = vector.broadcast %cst_170 : f32 to vector<8x128xf32>
      %307 = arith.subf %306, %305 : vector<8x128xf32>
      %308 = arith.mulf %304, %307 : vector<8x128xf32>
      %309 = vector.broadcast %cst_18 : f32 to vector<8x128xf32>
      %310 = arith.mulf %309, %297 : vector<8x128xf32>
      %311 = arith.mulf %310, %308 : vector<8x128xf32>
      %312 = arith.addf %arg12, %311 : vector<8x128xf32>
      %cst_171 = arith.constant 5.937500e+01 : f32
      %313 = vector.broadcast %cst_171 : f32 to vector<8x128xf32>
      %314 = arith.subf %123, %313 : vector<8x128xf32>
      %315 = math.absf %314 : vector<8x128xf32>
      %cst_172 = arith.constant 0.000000e+00 : f32
      %316 = vector.broadcast %cst_172 : f32 to vector<8x128xf32>
      %317 = arith.subf %316, %315 : vector<8x128xf32>
      %318 = math.exp %317 : vector<8x128xf32>
      %319 = vector.broadcast %cst_17 : f32 to vector<8x128xf32>
      %320 = arith.mulf %319, %318 : vector<8x128xf32>
      %cst_173 = arith.constant 1.000000e+00 : f32
      %321 = vector.broadcast %cst_173 : f32 to vector<8x128xf32>
      %322 = arith.addf %321, %320 : vector<8x128xf32>
      %323 = arith.mulf %318, %318 : vector<8x128xf32>
      %324 = arith.addf %322, %323 : vector<8x128xf32>
      %325 = tpu.reciprocal %324 {approx = true} : vector<8x128xf32> -> vector<8x128xf32>
      %326 = arith.mulf %324, %325 : vector<8x128xf32>
      %cst_174 = arith.constant 2.000000e+00 : f32
      %327 = vector.broadcast %cst_174 : f32 to vector<8x128xf32>
      %328 = arith.subf %327, %326 : vector<8x128xf32>
      %329 = arith.mulf %325, %328 : vector<8x128xf32>
      %330 = vector.broadcast %cst_18 : f32 to vector<8x128xf32>
      %331 = arith.mulf %330, %318 : vector<8x128xf32>
      %332 = arith.mulf %331, %329 : vector<8x128xf32>
      %333 = arith.addf %arg13, %332 : vector<8x128xf32>
      %cst_175 = arith.constant 6.562500e+01 : f32
      %334 = vector.broadcast %cst_175 : f32 to vector<8x128xf32>
      %335 = arith.subf %123, %334 : vector<8x128xf32>
      %336 = math.absf %335 : vector<8x128xf32>
      %cst_176 = arith.constant 0.000000e+00 : f32
      %337 = vector.broadcast %cst_176 : f32 to vector<8x128xf32>
      %338 = arith.subf %337, %336 : vector<8x128xf32>
      %339 = math.exp %338 : vector<8x128xf32>
      %340 = vector.broadcast %cst_17 : f32 to vector<8x128xf32>
      %341 = arith.mulf %340, %339 : vector<8x128xf32>
      %cst_177 = arith.constant 1.000000e+00 : f32
      %342 = vector.broadcast %cst_177 : f32 to vector<8x128xf32>
      %343 = arith.addf %342, %341 : vector<8x128xf32>
      %344 = arith.mulf %339, %339 : vector<8x128xf32>
      %345 = arith.addf %343, %344 : vector<8x128xf32>
      %346 = tpu.reciprocal %345 {approx = true} : vector<8x128xf32> -> vector<8x128xf32>
      %347 = arith.mulf %345, %346 : vector<8x128xf32>
      %cst_178 = arith.constant 2.000000e+00 : f32
      %348 = vector.broadcast %cst_178 : f32 to vector<8x128xf32>
      %349 = arith.subf %348, %347 : vector<8x128xf32>
      %350 = arith.mulf %346, %349 : vector<8x128xf32>
      %351 = vector.broadcast %cst_18 : f32 to vector<8x128xf32>
      %352 = arith.mulf %351, %339 : vector<8x128xf32>
      %353 = arith.mulf %352, %350 : vector<8x128xf32>
      %354 = arith.addf %arg14, %353 : vector<8x128xf32>
      %cst_179 = arith.constant 7.187500e+01 : f32
      %355 = vector.broadcast %cst_179 : f32 to vector<8x128xf32>
      %356 = arith.subf %123, %355 : vector<8x128xf32>
      %357 = math.absf %356 : vector<8x128xf32>
      %cst_180 = arith.constant 0.000000e+00 : f32
      %358 = vector.broadcast %cst_180 : f32 to vector<8x128xf32>
      %359 = arith.subf %358, %357 : vector<8x128xf32>
      %360 = math.exp %359 : vector<8x128xf32>
      %361 = vector.broadcast %cst_17 : f32 to vector<8x128xf32>
      %362 = arith.mulf %361, %360 : vector<8x128xf32>
      %cst_181 = arith.constant 1.000000e+00 : f32
      %363 = vector.broadcast %cst_181 : f32 to vector<8x128xf32>
      %364 = arith.addf %363, %362 : vector<8x128xf32>
      %365 = arith.mulf %360, %360 : vector<8x128xf32>
      %366 = arith.addf %364, %365 : vector<8x128xf32>
      %367 = tpu.reciprocal %366 {approx = true} : vector<8x128xf32> -> vector<8x128xf32>
      %368 = arith.mulf %366, %367 : vector<8x128xf32>
      %cst_182 = arith.constant 2.000000e+00 : f32
      %369 = vector.broadcast %cst_182 : f32 to vector<8x128xf32>
      %370 = arith.subf %369, %368 : vector<8x128xf32>
      %371 = arith.mulf %367, %370 : vector<8x128xf32>
      %372 = vector.broadcast %cst_18 : f32 to vector<8x128xf32>
      %373 = arith.mulf %372, %360 : vector<8x128xf32>
      %374 = arith.mulf %373, %371 : vector<8x128xf32>
      %375 = arith.addf %arg15, %374 : vector<8x128xf32>
      %cst_183 = arith.constant 7.812500e+01 : f32
      %376 = vector.broadcast %cst_183 : f32 to vector<8x128xf32>
      %377 = arith.subf %123, %376 : vector<8x128xf32>
      %378 = math.absf %377 : vector<8x128xf32>
      %cst_184 = arith.constant 0.000000e+00 : f32
      %379 = vector.broadcast %cst_184 : f32 to vector<8x128xf32>
      %380 = arith.subf %379, %378 : vector<8x128xf32>
      %381 = math.exp %380 : vector<8x128xf32>
      %382 = vector.broadcast %cst_17 : f32 to vector<8x128xf32>
      %383 = arith.mulf %382, %381 : vector<8x128xf32>
      %cst_185 = arith.constant 1.000000e+00 : f32
      %384 = vector.broadcast %cst_185 : f32 to vector<8x128xf32>
      %385 = arith.addf %384, %383 : vector<8x128xf32>
      %386 = arith.mulf %381, %381 : vector<8x128xf32>
      %387 = arith.addf %385, %386 : vector<8x128xf32>
      %388 = tpu.reciprocal %387 {approx = true} : vector<8x128xf32> -> vector<8x128xf32>
      %389 = arith.mulf %387, %388 : vector<8x128xf32>
      %cst_186 = arith.constant 2.000000e+00 : f32
      %390 = vector.broadcast %cst_186 : f32 to vector<8x128xf32>
      %391 = arith.subf %390, %389 : vector<8x128xf32>
      %392 = arith.mulf %388, %391 : vector<8x128xf32>
      %393 = vector.broadcast %cst_18 : f32 to vector<8x128xf32>
      %394 = arith.mulf %393, %381 : vector<8x128xf32>
      %395 = arith.mulf %394, %392 : vector<8x128xf32>
      %396 = arith.addf %arg16, %395 : vector<8x128xf32>
      %cst_187 = arith.constant 8.437500e+01 : f32
      %397 = vector.broadcast %cst_187 : f32 to vector<8x128xf32>
      %398 = arith.subf %123, %397 : vector<8x128xf32>
      %399 = math.absf %398 : vector<8x128xf32>
      %cst_188 = arith.constant 0.000000e+00 : f32
      %400 = vector.broadcast %cst_188 : f32 to vector<8x128xf32>
      %401 = arith.subf %400, %399 : vector<8x128xf32>
      %402 = math.exp %401 : vector<8x128xf32>
      %403 = vector.broadcast %cst_17 : f32 to vector<8x128xf32>
      %404 = arith.mulf %403, %402 : vector<8x128xf32>
      %cst_189 = arith.constant 1.000000e+00 : f32
      %405 = vector.broadcast %cst_189 : f32 to vector<8x128xf32>
      %406 = arith.addf %405, %404 : vector<8x128xf32>
      %407 = arith.mulf %402, %402 : vector<8x128xf32>
      %408 = arith.addf %406, %407 : vector<8x128xf32>
      %409 = tpu.reciprocal %408 {approx = true} : vector<8x128xf32> -> vector<8x128xf32>
      %410 = arith.mulf %408, %409 : vector<8x128xf32>
      %cst_190 = arith.constant 2.000000e+00 : f32
      %411 = vector.broadcast %cst_190 : f32 to vector<8x128xf32>
      %412 = arith.subf %411, %410 : vector<8x128xf32>
      %413 = arith.mulf %409, %412 : vector<8x128xf32>
      %414 = vector.broadcast %cst_18 : f32 to vector<8x128xf32>
      %415 = arith.mulf %414, %402 : vector<8x128xf32>
      %416 = arith.mulf %415, %413 : vector<8x128xf32>
      %417 = arith.addf %arg17, %416 : vector<8x128xf32>
      %cst_191 = arith.constant 9.062500e+01 : f32
      %418 = vector.broadcast %cst_191 : f32 to vector<8x128xf32>
      %419 = arith.subf %123, %418 : vector<8x128xf32>
      %420 = math.absf %419 : vector<8x128xf32>
      %cst_192 = arith.constant 0.000000e+00 : f32
      %421 = vector.broadcast %cst_192 : f32 to vector<8x128xf32>
      %422 = arith.subf %421, %420 : vector<8x128xf32>
      %423 = math.exp %422 : vector<8x128xf32>
      %424 = vector.broadcast %cst_17 : f32 to vector<8x128xf32>
      %425 = arith.mulf %424, %423 : vector<8x128xf32>
      %cst_193 = arith.constant 1.000000e+00 : f32
      %426 = vector.broadcast %cst_193 : f32 to vector<8x128xf32>
      %427 = arith.addf %426, %425 : vector<8x128xf32>
      %428 = arith.mulf %423, %423 : vector<8x128xf32>
      %429 = arith.addf %427, %428 : vector<8x128xf32>
      %430 = tpu.reciprocal %429 {approx = true} : vector<8x128xf32> -> vector<8x128xf32>
      %431 = arith.mulf %429, %430 : vector<8x128xf32>
      %cst_194 = arith.constant 2.000000e+00 : f32
      %432 = vector.broadcast %cst_194 : f32 to vector<8x128xf32>
      %433 = arith.subf %432, %431 : vector<8x128xf32>
      %434 = arith.mulf %430, %433 : vector<8x128xf32>
      %435 = vector.broadcast %cst_18 : f32 to vector<8x128xf32>
      %436 = arith.mulf %435, %423 : vector<8x128xf32>
      %437 = arith.mulf %436, %434 : vector<8x128xf32>
      %438 = arith.addf %arg18, %437 : vector<8x128xf32>
      %cst_195 = arith.constant 9.687500e+01 : f32
      %439 = vector.broadcast %cst_195 : f32 to vector<8x128xf32>
      %440 = arith.subf %123, %439 : vector<8x128xf32>
      %441 = math.absf %440 : vector<8x128xf32>
      %cst_196 = arith.constant 0.000000e+00 : f32
      %442 = vector.broadcast %cst_196 : f32 to vector<8x128xf32>
      %443 = arith.subf %442, %441 : vector<8x128xf32>
      %444 = math.exp %443 : vector<8x128xf32>
      %445 = vector.broadcast %cst_17 : f32 to vector<8x128xf32>
      %446 = arith.mulf %445, %444 : vector<8x128xf32>
      %cst_197 = arith.constant 1.000000e+00 : f32
      %447 = vector.broadcast %cst_197 : f32 to vector<8x128xf32>
      %448 = arith.addf %447, %446 : vector<8x128xf32>
      %449 = arith.mulf %444, %444 : vector<8x128xf32>
      %450 = arith.addf %448, %449 : vector<8x128xf32>
      %451 = tpu.reciprocal %450 {approx = true} : vector<8x128xf32> -> vector<8x128xf32>
      %452 = arith.mulf %450, %451 : vector<8x128xf32>
      %cst_198 = arith.constant 2.000000e+00 : f32
      %453 = vector.broadcast %cst_198 : f32 to vector<8x128xf32>
      %454 = arith.subf %453, %452 : vector<8x128xf32>
      %455 = arith.mulf %451, %454 : vector<8x128xf32>
      %456 = vector.broadcast %cst_18 : f32 to vector<8x128xf32>
      %457 = arith.mulf %456, %444 : vector<8x128xf32>
      %458 = arith.mulf %457, %455 : vector<8x128xf32>
      %459 = arith.addf %arg19, %458 : vector<8x128xf32>
      scf.yield %144, %165, %186, %207, %228, %249, %270, %291, %312, %333, %354, %375, %396, %417, %438, %459 : vector<8x128xf32>, vector<8x128xf32>, vector<8x128xf32>, vector<8x128xf32>, vector<8x128xf32>, vector<8x128xf32>, vector<8x128xf32>, vector<8x128xf32>, vector<8x128xf32>, vector<8x128xf32>, vector<8x128xf32>, vector<8x128xf32>, vector<8x128xf32>, vector<8x128xf32>, vector<8x128xf32>, vector<8x128xf32>
    }
    %c2_i32_20 = arith.constant 2 : i32
    %c0 = arith.constant 0 : index
    %c0_21 = arith.constant 0 : index
    %c0_22 = arith.constant 0 : index
    %c0_23 = arith.constant 0 : index
    %21 = vector.load %arg2[%c0, %c0_21, %c0_22, %c0_23] : memref<1x16x8x128xf32, #tpu.memory_space<vmem>>, vector<1x1x8x128xf32>
    %22 = vector.shape_cast %21 : vector<1x1x8x128xf32> to vector<8x128xf32>
    %23 = arith.addf %22, %20#0 : vector<8x128xf32>
    %c0_24 = arith.constant 0 : index
    %c0_25 = arith.constant 0 : index
    %c0_26 = arith.constant 0 : index
    %c0_27 = arith.constant 0 : index
    %24 = vector.load %arg2[%c0_24, %c0_25, %c0_26, %c0_27] : memref<1x16x8x128xf32, #tpu.memory_space<vmem>>, vector<1x1x8x128xf32>
    %25 = vector.shape_cast %24 : vector<1x1x8x128xf32> to vector<8x128xf32>
    %26 = vector.shape_cast %23 : vector<8x128xf32> to vector<1x1x8x128xf32>
    tpu.vector_store %arg2[%c0_24, %c0_25, %c0_26, %c0_27], %26 {strides = array<i32>} : memref<1x16x8x128xf32, #tpu.memory_space<vmem>>, vector<1x1x8x128xf32>,
    %c0_28 = arith.constant 0 : index
    %c1 = arith.constant 1 : index
    %c0_29 = arith.constant 0 : index
    %c0_30 = arith.constant 0 : index
    %27 = vector.load %arg2[%c0_28, %c1, %c0_29, %c0_30] : memref<1x16x8x128xf32, #tpu.memory_space<vmem>>, vector<1x1x8x128xf32>
    %28 = vector.shape_cast %27 : vector<1x1x8x128xf32> to vector<8x128xf32>
    %29 = arith.addf %28, %20#1 : vector<8x128xf32>
    %c0_31 = arith.constant 0 : index
    %c1_32 = arith.constant 1 : index
    %c0_33 = arith.constant 0 : index
    %c0_34 = arith.constant 0 : index
    %30 = vector.load %arg2[%c0_31, %c1_32, %c0_33, %c0_34] : memref<1x16x8x128xf32, #tpu.memory_space<vmem>>, vector<1x1x8x128xf32>
    %31 = vector.shape_cast %30 : vector<1x1x8x128xf32> to vector<8x128xf32>
    %32 = vector.shape_cast %29 : vector<8x128xf32> to vector<1x1x8x128xf32>
    tpu.vector_store %arg2[%c0_31, %c1_32, %c0_33, %c0_34], %32 {strides = array<i32>} : memref<1x16x8x128xf32, #tpu.memory_space<vmem>>, vector<1x1x8x128xf32>,
    %c0_35 = arith.constant 0 : index
    %c2 = arith.constant 2 : index
    %c0_36 = arith.constant 0 : index
    %c0_37 = arith.constant 0 : index
    %33 = vector.load %arg2[%c0_35, %c2, %c0_36, %c0_37] : memref<1x16x8x128xf32, #tpu.memory_space<vmem>>, vector<1x1x8x128xf32>
    %34 = vector.shape_cast %33 : vector<1x1x8x128xf32> to vector<8x128xf32>
    %35 = arith.addf %34, %20#2 : vector<8x128xf32>
    %c0_38 = arith.constant 0 : index
    %c2_39 = arith.constant 2 : index
    %c0_40 = arith.constant 0 : index
    %c0_41 = arith.constant 0 : index
    %36 = vector.load %arg2[%c0_38, %c2_39, %c0_40, %c0_41] : memref<1x16x8x128xf32, #tpu.memory_space<vmem>>, vector<1x1x8x128xf32>
    %37 = vector.shape_cast %36 : vector<1x1x8x128xf32> to vector<8x128xf32>
    %38 = vector.shape_cast %35 : vector<8x128xf32> to vector<1x1x8x128xf32>
    tpu.vector_store %arg2[%c0_38, %c2_39, %c0_40, %c0_41], %38 {strides = array<i32>} : memref<1x16x8x128xf32, #tpu.memory_space<vmem>>, vector<1x1x8x128xf32>,
    %c0_42 = arith.constant 0 : index
    %c3 = arith.constant 3 : index
    %c0_43 = arith.constant 0 : index
    %c0_44 = arith.constant 0 : index
    %39 = vector.load %arg2[%c0_42, %c3, %c0_43, %c0_44] : memref<1x16x8x128xf32, #tpu.memory_space<vmem>>, vector<1x1x8x128xf32>
    %40 = vector.shape_cast %39 : vector<1x1x8x128xf32> to vector<8x128xf32>
    %41 = arith.addf %40, %20#3 : vector<8x128xf32>
    %c0_45 = arith.constant 0 : index
    %c3_46 = arith.constant 3 : index
    %c0_47 = arith.constant 0 : index
    %c0_48 = arith.constant 0 : index
    %42 = vector.load %arg2[%c0_45, %c3_46, %c0_47, %c0_48] : memref<1x16x8x128xf32, #tpu.memory_space<vmem>>, vector<1x1x8x128xf32>
    %43 = vector.shape_cast %42 : vector<1x1x8x128xf32> to vector<8x128xf32>
    %44 = vector.shape_cast %41 : vector<8x128xf32> to vector<1x1x8x128xf32>
    tpu.vector_store %arg2[%c0_45, %c3_46, %c0_47, %c0_48], %44 {strides = array<i32>} : memref<1x16x8x128xf32, #tpu.memory_space<vmem>>, vector<1x1x8x128xf32>,
    %c0_49 = arith.constant 0 : index
    %c4 = arith.constant 4 : index
    %c0_50 = arith.constant 0 : index
    %c0_51 = arith.constant 0 : index
    %45 = vector.load %arg2[%c0_49, %c4, %c0_50, %c0_51] : memref<1x16x8x128xf32, #tpu.memory_space<vmem>>, vector<1x1x8x128xf32>
    %46 = vector.shape_cast %45 : vector<1x1x8x128xf32> to vector<8x128xf32>
    %47 = arith.addf %46, %20#4 : vector<8x128xf32>
    %c0_52 = arith.constant 0 : index
    %c4_53 = arith.constant 4 : index
    %c0_54 = arith.constant 0 : index
    %c0_55 = arith.constant 0 : index
    %48 = vector.load %arg2[%c0_52, %c4_53, %c0_54, %c0_55] : memref<1x16x8x128xf32, #tpu.memory_space<vmem>>, vector<1x1x8x128xf32>
    %49 = vector.shape_cast %48 : vector<1x1x8x128xf32> to vector<8x128xf32>
    %50 = vector.shape_cast %47 : vector<8x128xf32> to vector<1x1x8x128xf32>
    tpu.vector_store %arg2[%c0_52, %c4_53, %c0_54, %c0_55], %50 {strides = array<i32>} : memref<1x16x8x128xf32, #tpu.memory_space<vmem>>, vector<1x1x8x128xf32>,
    %c0_56 = arith.constant 0 : index
    %c5 = arith.constant 5 : index
    %c0_57 = arith.constant 0 : index
    %c0_58 = arith.constant 0 : index
    %51 = vector.load %arg2[%c0_56, %c5, %c0_57, %c0_58] : memref<1x16x8x128xf32, #tpu.memory_space<vmem>>, vector<1x1x8x128xf32>
    %52 = vector.shape_cast %51 : vector<1x1x8x128xf32> to vector<8x128xf32>
    %53 = arith.addf %52, %20#5 : vector<8x128xf32>
    %c0_59 = arith.constant 0 : index
    %c5_60 = arith.constant 5 : index
    %c0_61 = arith.constant 0 : index
    %c0_62 = arith.constant 0 : index
    %54 = vector.load %arg2[%c0_59, %c5_60, %c0_61, %c0_62] : memref<1x16x8x128xf32, #tpu.memory_space<vmem>>, vector<1x1x8x128xf32>
    %55 = vector.shape_cast %54 : vector<1x1x8x128xf32> to vector<8x128xf32>
    %56 = vector.shape_cast %53 : vector<8x128xf32> to vector<1x1x8x128xf32>
    tpu.vector_store %arg2[%c0_59, %c5_60, %c0_61, %c0_62], %56 {strides = array<i32>} : memref<1x16x8x128xf32, #tpu.memory_space<vmem>>, vector<1x1x8x128xf32>,
    %c0_63 = arith.constant 0 : index
    %c6 = arith.constant 6 : index
    %c0_64 = arith.constant 0 : index
    %c0_65 = arith.constant 0 : index
    %57 = vector.load %arg2[%c0_63, %c6, %c0_64, %c0_65] : memref<1x16x8x128xf32, #tpu.memory_space<vmem>>, vector<1x1x8x128xf32>
    %58 = vector.shape_cast %57 : vector<1x1x8x128xf32> to vector<8x128xf32>
    %59 = arith.addf %58, %20#6 : vector<8x128xf32>
    %c0_66 = arith.constant 0 : index
    %c6_67 = arith.constant 6 : index
    %c0_68 = arith.constant 0 : index
    %c0_69 = arith.constant 0 : index
    %60 = vector.load %arg2[%c0_66, %c6_67, %c0_68, %c0_69] : memref<1x16x8x128xf32, #tpu.memory_space<vmem>>, vector<1x1x8x128xf32>
    %61 = vector.shape_cast %60 : vector<1x1x8x128xf32> to vector<8x128xf32>
    %62 = vector.shape_cast %59 : vector<8x128xf32> to vector<1x1x8x128xf32>
    tpu.vector_store %arg2[%c0_66, %c6_67, %c0_68, %c0_69], %62 {strides = array<i32>} : memref<1x16x8x128xf32, #tpu.memory_space<vmem>>, vector<1x1x8x128xf32>,
    %c0_70 = arith.constant 0 : index
    %c7 = arith.constant 7 : index
    %c0_71 = arith.constant 0 : index
    %c0_72 = arith.constant 0 : index
    %63 = vector.load %arg2[%c0_70, %c7, %c0_71, %c0_72] : memref<1x16x8x128xf32, #tpu.memory_space<vmem>>, vector<1x1x8x128xf32>
    %64 = vector.shape_cast %63 : vector<1x1x8x128xf32> to vector<8x128xf32>
    %65 = arith.addf %64, %20#7 : vector<8x128xf32>
    %c0_73 = arith.constant 0 : index
    %c7_74 = arith.constant 7 : index
    %c0_75 = arith.constant 0 : index
    %c0_76 = arith.constant 0 : index
    %66 = vector.load %arg2[%c0_73, %c7_74, %c0_75, %c0_76] : memref<1x16x8x128xf32, #tpu.memory_space<vmem>>, vector<1x1x8x128xf32>
    %67 = vector.shape_cast %66 : vector<1x1x8x128xf32> to vector<8x128xf32>
    %68 = vector.shape_cast %65 : vector<8x128xf32> to vector<1x1x8x128xf32>
    tpu.vector_store %arg2[%c0_73, %c7_74, %c0_75, %c0_76], %68 {strides = array<i32>} : memref<1x16x8x128xf32, #tpu.memory_space<vmem>>, vector<1x1x8x128xf32>,
    %c0_77 = arith.constant 0 : index
    %c8 = arith.constant 8 : index
    %c0_78 = arith.constant 0 : index
    %c0_79 = arith.constant 0 : index
    %69 = vector.load %arg2[%c0_77, %c8, %c0_78, %c0_79] : memref<1x16x8x128xf32, #tpu.memory_space<vmem>>, vector<1x1x8x128xf32>
    %70 = vector.shape_cast %69 : vector<1x1x8x128xf32> to vector<8x128xf32>
    %71 = arith.addf %70, %20#8 : vector<8x128xf32>
    %c0_80 = arith.constant 0 : index
    %c8_81 = arith.constant 8 : index
    %c0_82 = arith.constant 0 : index
    %c0_83 = arith.constant 0 : index
    %72 = vector.load %arg2[%c0_80, %c8_81, %c0_82, %c0_83] : memref<1x16x8x128xf32, #tpu.memory_space<vmem>>, vector<1x1x8x128xf32>
    %73 = vector.shape_cast %72 : vector<1x1x8x128xf32> to vector<8x128xf32>
    %74 = vector.shape_cast %71 : vector<8x128xf32> to vector<1x1x8x128xf32>
    tpu.vector_store %arg2[%c0_80, %c8_81, %c0_82, %c0_83], %74 {strides = array<i32>} : memref<1x16x8x128xf32, #tpu.memory_space<vmem>>, vector<1x1x8x128xf32>,
    %c0_84 = arith.constant 0 : index
    %c9 = arith.constant 9 : index
    %c0_85 = arith.constant 0 : index
    %c0_86 = arith.constant 0 : index
    %75 = vector.load %arg2[%c0_84, %c9, %c0_85, %c0_86] : memref<1x16x8x128xf32, #tpu.memory_space<vmem>>, vector<1x1x8x128xf32>
    %76 = vector.shape_cast %75 : vector<1x1x8x128xf32> to vector<8x128xf32>
    %77 = arith.addf %76, %20#9 : vector<8x128xf32>
    %c0_87 = arith.constant 0 : index
    %c9_88 = arith.constant 9 : index
    %c0_89 = arith.constant 0 : index
    %c0_90 = arith.constant 0 : index
    %78 = vector.load %arg2[%c0_87, %c9_88, %c0_89, %c0_90] : memref<1x16x8x128xf32, #tpu.memory_space<vmem>>, vector<1x1x8x128xf32>
    %79 = vector.shape_cast %78 : vector<1x1x8x128xf32> to vector<8x128xf32>
    %80 = vector.shape_cast %77 : vector<8x128xf32> to vector<1x1x8x128xf32>
    tpu.vector_store %arg2[%c0_87, %c9_88, %c0_89, %c0_90], %80 {strides = array<i32>} : memref<1x16x8x128xf32, #tpu.memory_space<vmem>>, vector<1x1x8x128xf32>,
    %c0_91 = arith.constant 0 : index
    %c10 = arith.constant 10 : index
    %c0_92 = arith.constant 0 : index
    %c0_93 = arith.constant 0 : index
    %81 = vector.load %arg2[%c0_91, %c10, %c0_92, %c0_93] : memref<1x16x8x128xf32, #tpu.memory_space<vmem>>, vector<1x1x8x128xf32>
    %82 = vector.shape_cast %81 : vector<1x1x8x128xf32> to vector<8x128xf32>
    %83 = arith.addf %82, %20#10 : vector<8x128xf32>
    %c0_94 = arith.constant 0 : index
    %c10_95 = arith.constant 10 : index
    %c0_96 = arith.constant 0 : index
    %c0_97 = arith.constant 0 : index
    %84 = vector.load %arg2[%c0_94, %c10_95, %c0_96, %c0_97] : memref<1x16x8x128xf32, #tpu.memory_space<vmem>>, vector<1x1x8x128xf32>
    %85 = vector.shape_cast %84 : vector<1x1x8x128xf32> to vector<8x128xf32>
    %86 = vector.shape_cast %83 : vector<8x128xf32> to vector<1x1x8x128xf32>
    tpu.vector_store %arg2[%c0_94, %c10_95, %c0_96, %c0_97], %86 {strides = array<i32>} : memref<1x16x8x128xf32, #tpu.memory_space<vmem>>, vector<1x1x8x128xf32>,
    %c0_98 = arith.constant 0 : index
    %c11 = arith.constant 11 : index
    %c0_99 = arith.constant 0 : index
    %c0_100 = arith.constant 0 : index
    %87 = vector.load %arg2[%c0_98, %c11, %c0_99, %c0_100] : memref<1x16x8x128xf32, #tpu.memory_space<vmem>>, vector<1x1x8x128xf32>
    %88 = vector.shape_cast %87 : vector<1x1x8x128xf32> to vector<8x128xf32>
    %89 = arith.addf %88, %20#11 : vector<8x128xf32>
    %c0_101 = arith.constant 0 : index
    %c11_102 = arith.constant 11 : index
    %c0_103 = arith.constant 0 : index
    %c0_104 = arith.constant 0 : index
    %90 = vector.load %arg2[%c0_101, %c11_102, %c0_103, %c0_104] : memref<1x16x8x128xf32, #tpu.memory_space<vmem>>, vector<1x1x8x128xf32>
    %91 = vector.shape_cast %90 : vector<1x1x8x128xf32> to vector<8x128xf32>
    %92 = vector.shape_cast %89 : vector<8x128xf32> to vector<1x1x8x128xf32>
    tpu.vector_store %arg2[%c0_101, %c11_102, %c0_103, %c0_104], %92 {strides = array<i32>} : memref<1x16x8x128xf32, #tpu.memory_space<vmem>>, vector<1x1x8x128xf32>,
    %c0_105 = arith.constant 0 : index
    %c12 = arith.constant 12 : index
    %c0_106 = arith.constant 0 : index
    %c0_107 = arith.constant 0 : index
    %93 = vector.load %arg2[%c0_105, %c12, %c0_106, %c0_107] : memref<1x16x8x128xf32, #tpu.memory_space<vmem>>, vector<1x1x8x128xf32>
    %94 = vector.shape_cast %93 : vector<1x1x8x128xf32> to vector<8x128xf32>
    %95 = arith.addf %94, %20#12 : vector<8x128xf32>
    %c0_108 = arith.constant 0 : index
    %c12_109 = arith.constant 12 : index
    %c0_110 = arith.constant 0 : index
    %c0_111 = arith.constant 0 : index
    %96 = vector.load %arg2[%c0_108, %c12_109, %c0_110, %c0_111] : memref<1x16x8x128xf32, #tpu.memory_space<vmem>>, vector<1x1x8x128xf32>
    %97 = vector.shape_cast %96 : vector<1x1x8x128xf32> to vector<8x128xf32>
    %98 = vector.shape_cast %95 : vector<8x128xf32> to vector<1x1x8x128xf32>
    tpu.vector_store %arg2[%c0_108, %c12_109, %c0_110, %c0_111], %98 {strides = array<i32>} : memref<1x16x8x128xf32, #tpu.memory_space<vmem>>, vector<1x1x8x128xf32>,
    %c0_112 = arith.constant 0 : index
    %c13 = arith.constant 13 : index
    %c0_113 = arith.constant 0 : index
    %c0_114 = arith.constant 0 : index
    %99 = vector.load %arg2[%c0_112, %c13, %c0_113, %c0_114] : memref<1x16x8x128xf32, #tpu.memory_space<vmem>>, vector<1x1x8x128xf32>
    %100 = vector.shape_cast %99 : vector<1x1x8x128xf32> to vector<8x128xf32>
    %101 = arith.addf %100, %20#13 : vector<8x128xf32>
    %c0_115 = arith.constant 0 : index
    %c13_116 = arith.constant 13 : index
    %c0_117 = arith.constant 0 : index
    %c0_118 = arith.constant 0 : index
    %102 = vector.load %arg2[%c0_115, %c13_116, %c0_117, %c0_118] : memref<1x16x8x128xf32, #tpu.memory_space<vmem>>, vector<1x1x8x128xf32>
    %103 = vector.shape_cast %102 : vector<1x1x8x128xf32> to vector<8x128xf32>
    %104 = vector.shape_cast %101 : vector<8x128xf32> to vector<1x1x8x128xf32>
    tpu.vector_store %arg2[%c0_115, %c13_116, %c0_117, %c0_118], %104 {strides = array<i32>} : memref<1x16x8x128xf32, #tpu.memory_space<vmem>>, vector<1x1x8x128xf32>,
    %c0_119 = arith.constant 0 : index
    %c14 = arith.constant 14 : index
    %c0_120 = arith.constant 0 : index
    %c0_121 = arith.constant 0 : index
    %105 = vector.load %arg2[%c0_119, %c14, %c0_120, %c0_121] : memref<1x16x8x128xf32, #tpu.memory_space<vmem>>, vector<1x1x8x128xf32>
    %106 = vector.shape_cast %105 : vector<1x1x8x128xf32> to vector<8x128xf32>
    %107 = arith.addf %106, %20#14 : vector<8x128xf32>
    %c0_122 = arith.constant 0 : index
    %c14_123 = arith.constant 14 : index
    %c0_124 = arith.constant 0 : index
    %c0_125 = arith.constant 0 : index
    %108 = vector.load %arg2[%c0_122, %c14_123, %c0_124, %c0_125] : memref<1x16x8x128xf32, #tpu.memory_space<vmem>>, vector<1x1x8x128xf32>
    %109 = vector.shape_cast %108 : vector<1x1x8x128xf32> to vector<8x128xf32>
    %110 = vector.shape_cast %107 : vector<8x128xf32> to vector<1x1x8x128xf32>
    tpu.vector_store %arg2[%c0_122, %c14_123, %c0_124, %c0_125], %110 {strides = array<i32>} : memref<1x16x8x128xf32, #tpu.memory_space<vmem>>, vector<1x1x8x128xf32>,
    %c0_126 = arith.constant 0 : index
    %c15 = arith.constant 15 : index
    %c0_127 = arith.constant 0 : index
    %c0_128 = arith.constant 0 : index
    %111 = vector.load %arg2[%c0_126, %c15, %c0_127, %c0_128] : memref<1x16x8x128xf32, #tpu.memory_space<vmem>>, vector<1x1x8x128xf32>
    %112 = vector.shape_cast %111 : vector<1x1x8x128xf32> to vector<8x128xf32>
    %113 = arith.addf %112, %20#15 : vector<8x128xf32>
    %c0_129 = arith.constant 0 : index
    %c15_130 = arith.constant 15 : index
    %c0_131 = arith.constant 0 : index
    %c0_132 = arith.constant 0 : index
    %114 = vector.load %arg2[%c0_129, %c15_130, %c0_131, %c0_132] : memref<1x16x8x128xf32, #tpu.memory_space<vmem>>, vector<1x1x8x128xf32>
    %115 = vector.shape_cast %114 : vector<1x1x8x128xf32> to vector<8x128xf32>
    %116 = vector.shape_cast %113 : vector<8x128xf32> to vector<1x1x8x128xf32>
    tpu.vector_store %arg2[%c0_129, %c15_130, %c0_131, %c0_132], %116 {strides = array<i32>} : memref<1x16x8x128xf32, #tpu.memory_space<vmem>>, vector<1x1x8x128xf32>,
    return
  }
  func.func @transform_0(%arg0: i32) -> (i32, i32, i32) {
    %c0_i32 = arith.constant 0 : i32
    %c0_i32_0 = arith.constant 0 : i32
    %c0_i32_1 = arith.constant 0 : i32
    return %c0_i32, %arg0, %c0_i32_0 : i32, i32, i32
  }
  func.func @transform_1(%arg0: i32) -> (i32, i32, i32, i32) {
    %c0_i32 = arith.constant 0 : i32
    %c0_i32_0 = arith.constant 0 : i32
    %c0_i32_1 = arith.constant 0 : i32
    %c0_i32_2 = arith.constant 0 : i32
    %c0_i32_3 = arith.constant 0 : i32
    return %c0_i32, %c0_i32_0, %c0_i32_1, %c0_i32_2 : i32, i32, i32, i32
  }
}

</mosaic_0001>

<llo_original>
// kernel: tpu_custom_call.1
$region0: #{tpu_custom_call.1}
  #allocation0 [shape = 'u32[]', space=smem, size = 0x4, offset = 0x4, fixed_abs, tag = 'smem constant byte address 0x4 - core index']
  #allocation1 [shape = 'u32[144,128]{1,0:T(1,128)}', space=vmem, size = 0x12000, scoped, tag = 'internal scratch']
  %s0 = inlined_call_operand.hbm [shape: f32[1,16,128], index: 0, kind: input, shape index: {}]
  %s1 = inlined_call_operand.hbm [shape: f32[1,16,8,128], index: 1, kind: output, shape index: {}]
  %s2 = sld [smem:[#allocation0]]
  $region29: #{tpu_custom_call.1} parent=0
    _
  %s4 = ssub.s32 1, %s2
  %s5 = scalar_select 0, %s4, %s2
  $region1: #{tpu_custom_call.1} parent=0
    #allocation2 [shape = 'u8[8192]{0}', space=vmem, size = 0x2000, scoped, tag = 'input window, operand 0, single buffered']
    #allocation3 [shape = 's32[1]{0}', space=sflag, size = 0x4, scoped, tag = 'scoped memory for tpu_custom_call.1']
    #allocation4 [shape = 's32[1]{0}', space=sflag, size = 0x4, scoped, tag = 'scoped memory for tpu_custom_call.1']
    #allocation5 [shape = 'u8[65536]{0}', space=vmem, size = 0x10000, scoped, tag = 'output window, operand 0, single buffered']
    %6 = vsyncpa [#allocation3], 0
    %7 = vsyncpa [#allocation4], 0
    // Predicated region
    $region2: #{tpu_custom_call.1} parent=1 // pred_check
      _
    $region3: #{tpu_custom_call.1} parent=1 // pred_check_branch
      %9 = sbr.rel (0) target = $region5
    $region4: #{tpu_custom_call.1} parent=1 // pred_region
      %s11 = ssub.s32 256, 256
      %12 = vsyncadd [#allocation3], %s11
      %s13 = sshll.u32 [#allocation2], 4
      %s14 = int_to_ptr.vmem [resolvable:$true] %s13
      %19 = dma.hbm_to_vmem [thread:$0]  %s0, 256, %s14, [#allocation3], 128, 128, 8
    $region5: #{tpu_custom_call.1} parent=1 // pred_fallthru
      _
    // Predicated region
    $region6: #{tpu_custom_call.1} parent=1 // pred_check
      _
    $region7: #{tpu_custom_call.1} parent=1 // pred_check_branch
      %21 = sbr.rel (0) target = $region9
    $region8: #{tpu_custom_call.1} parent=1 // pred_region
      %22 = dma.done [#allocation3], 256
    $region9: #{tpu_custom_call.1} parent=1 // pred_fallthru
      _
    %p23 = scmp.eq.s32.totalorder 0, 0
    // Predicated region
    $region10: #{tpu_custom_call.1} parent=1 // pred_check
      %p24 = pneg %p23
    $region11: #{tpu_custom_call.1} parent=1 // pred_check_branch
      %26 = sbr.rel (%p24) target = $region13
    $region12: #{tpu_custom_call.1} parent=1 // pred_region
      %27 = vst [vmem:[#allocation5] sm:$0xff] 0.0
      %28 = vst [vmem:[#allocation5 + $0x8] sm:$0xff] 0.0
      %29 = vst [vmem:[#allocation5 + $0x10] sm:$0xff] 0.0
      %30 = vst [vmem:[#allocation5 + $0x18] sm:$0xff] 0.0
      %31 = vst [vmem:[#allocation5 + $0x20] sm:$0xff] 0.0
      %32 = vst [vmem:[#allocation5 + $0x28] sm:$0xff] 0.0
      %33 = vst [vmem:[#allocation5 + $0x30] sm:$0xff] 0.0
      %34 = vst [vmem:[#allocation5 + $0x38] sm:$0xff] 0.0
      %35 = vst [vmem:[#allocation5 + $0x40] sm:$0xff] 0.0
      %36 = vst [vmem:[#allocation5 + $0x48] sm:$0xff] 0.0
      %37 = vst [vmem:[#allocation5 + $0x50] sm:$0xff] 0.0
      %38 = vst [vmem:[#allocation5 + $0x58] sm:$0xff] 0.0
      %39 = vst [vmem:[#allocation5 + $0x60] sm:$0xff] 0.0
      %40 = vst [vmem:[#allocation5 + $0x68] sm:$0xff] 0.0
      %41 = vst [vmem:[#allocation5 + $0x70] sm:$0xff] 0.0
      %42 = vst [vmem:[#allocation5 + $0x78] sm:$0xff] 0.0
    $region13: #{tpu_custom_call.1} parent=1 // pred_fallthru
      _
    loop: start=0, step=1, limit=2
    $region14: #{tpu_custom_call.1} parent=1 // loop_pre_header
      _
    $region15: #{tpu_custom_call.1} parent=1 // loop_header
      %s44 = sphi 0, %s48
      %p45 = scmp.ge.s32.totalorder %s44, 2
      %v49 = vphi 0.0, %v84
      %v50 = vphi 0.0, %v100
      %v51 = vphi 0.0, %v116
      %v52 = vphi 0.0, %v132
      %v53 = vphi 0.0, %v148
      %v54 = vphi 0.0, %v164
      %v55 = vphi 0.0, %v180
      %v56 = vphi 0.0, %v196
      %v57 = vphi 0.0, %v212
      %v58 = vphi 0.0, %v228
      %v59 = vphi 0.0, %v244
      %v60 = vphi 0.0, %v260
      %v61 = vphi 0.0, %v276
      %v62 = vphi 0.0, %v292
      %v63 = vphi 0.0, %v308
      %v64 = vphi 0.0, %v324
    $region16: #{tpu_custom_call.1} parent=1 // loop_header_branch
      %47 = sbr.rel (%p45) target = $region20
    $region17: #{tpu_custom_call.1} parent=1 // loop_body
      %s65 = smul.u32 %s44, 8
      %s66 = scalar_lea.vmem [#allocation2], %s65
      %v67 = vld [vmem:[%s66] sm:$0xff]
      %v68 = vmul.f32 %v67, 100.0
      %v69 = vsub.f32 %v68, 3.125
      %v70 = vand.u32 2147483647, %v69
      %v71 = vsub.f32 0.0, %v70
      %v72 = vmul.f32 %v71, 1.442695
      %v73 = vpow.pop %v72
      %v74 = vmul.f32 %v73, 22.803831
      %v75 = vadd.f32 %v74, 1.0
      %v76 = vmul.f32 %v73, %v73
      %v77 = vadd.f32 %v75, %v76
      %v78 = vrcp.pop %v77
      %v79 = vmul.f32 %v77, %v78
      %v80 = vsub.f32 2.0, %v79
      %v81 = vmul.f32 %v78, %v80
      %v82 = vmul.f32 %v73, 22.715958
      %v83 = vmul.f32 %v82, %v81
      %v84 = vadd.f32 %v49, %v83
      %v85 = vsub.f32 %v68, 9.375
      %v86 = vand.u32 2147483647, %v85
      %v87 = vsub.f32 0.0, %v86
      %v88 = vmul.f32 %v87, 1.442695
      %v89 = vpow.pop %v88
      %v90 = vmul.f32 %v89, 22.803831
      %v91 = vadd.f32 %v90, 1.0
      %v92 = vmul.f32 %v89, %v89
      %v93 = vadd.f32 %v91, %v92
      %v94 = vrcp.pop %v93
      %v95 = vmul.f32 %v93, %v94
      %v96 = vsub.f32 2.0, %v95
      %v97 = vmul.f32 %v94, %v96
      %v98 = vmul.f32 %v89, 22.715958
      %v99 = vmul.f32 %v98, %v97
      %v100 = vadd.f32 %v50, %v99
      %v101 = vsub.f32 %v68, 15.625
      %v102 = vand.u32 2147483647, %v101
      %v103 = vsub.f32 0.0, %v102
      %v104 = vmul.f32 %v103, 1.442695
      %v105 = vpow.pop %v104
      %v106 = vmul.f32 %v105, 22.803831
      %v107 = vadd.f32 %v106, 1.0
      %v108 = vmul.f32 %v105, %v105
      %v109 = vadd.f32 %v107, %v108
      %v110 = vrcp.pop %v109
      %v111 = vmul.f32 %v109, %v110
      %v112 = vsub.f32 2.0, %v111
      %v113 = vmul.f32 %v110, %v112
      %v114 = vmul.f32 %v105, 22.715958
      %v115 = vmul.f32 %v114, %v113
      %v116 = vadd.f32 %v51, %v115
      %v117 = vsub.f32 %v68, 21.875
      %v118 = vand.u32 2147483647, %v117
      %v119 = vsub.f32 0.0, %v118
      %v120 = vmul.f32 %v119, 1.442695
      %v121 = vpow.pop %v120
      %v122 = vmul.f32 %v121, 22.803831
      %v123 = vadd.f32 %v122, 1.0
      %v124 = vmul.f32 %v121, %v121
      %v125 = vadd.f32 %v123, %v124
      %v126 = vrcp.pop %v125
      %v127 = vmul.f32 %v125, %v126
      %v128 = vsub.f32 2.0, %v127
      %v129 = vmul.f32 %v126, %v128
      %v130 = vmul.f32 %v121, 22.715958
      %v131 = vmul.f32 %v130, %v129
      %v132 = vadd.f32 %v52, %v131
      %v133 = vsub.f32 %v68, 28.125
      %v134 = vand.u32 2147483647, %v133
      %v135 = vsub.f32 0.0, %v134
      %v136 = vmul.f32 %v135, 1.442695
      %v137 = vpow.pop %v136
      %v138 = vmul.f32 %v137, 22.803831
      %v139 = vadd.f32 %v138, 1.0
      %v140 = vmul.f32 %v137, %v137
      %v141 = vadd.f32 %v139, %v140
      %v142 = vrcp.pop %v141
      %v143 = vmul.f32 %v141, %v142
      %v144 = vsub.f32 2.0, %v143
      %v145 = vmul.f32 %v142, %v144
      %v146 = vmul.f32 %v137, 22.715958
      %v147 = vmul.f32 %v146, %v145
      %v148 = vadd.f32 %v53, %v147
      %v149 = vsub.f32 %v68, 34.375
      %v150 = vand.u32 2147483647, %v149
      %v151 = vsub.f32 0.0, %v150
      %v152 = vmul.f32 %v151, 1.442695
      %v153 = vpow.pop %v152
      %v154 = vmul.f32 %v153, 22.803831
      %v155 = vadd.f32 %v154, 1.0
      %v156 = vmul.f32 %v153, %v153
      %v157 = vadd.f32 %v155, %v156
      %v158 = vrcp.pop %v157
      %v159 = vmul.f32 %v157, %v158
      %v160 = vsub.f32 2.0, %v159
      %v161 = vmul.f32 %v158, %v160
      %v162 = vmul.f32 %v153, 22.715958
      %v163 = vmul.f32 %v162, %v161
      %v164 = vadd.f32 %v54, %v163
      %v165 = vsub.f32 %v68, 40.625
      %v166 = vand.u32 2147483647, %v165
      %v167 = vsub.f32 0.0, %v166
      %v168 = vmul.f32 %v167, 1.442695
      %v169 = vpow.pop %v168
      %v170 = vmul.f32 %v169, 22.803831
      %v171 = vadd.f32 %v170, 1.0
      %v172 = vmul.f32 %v169, %v169
      %v173 = vadd.f32 %v171, %v172
      %v174 = vrcp.pop %v173
      %v175 = vmul.f32 %v173, %v174
      %v176 = vsub.f32 2.0, %v175
      %v177 = vmul.f32 %v174, %v176
      %v178 = vmul.f32 %v169, 22.715958
      %v179 = vmul.f32 %v178, %v177
      %v180 = vadd.f32 %v55, %v179
      %v181 = vsub.f32 %v68, 46.875
      %v182 = vand.u32 2147483647, %v181
      %v183 = vsub.f32 0.0, %v182
      %v184 = vmul.f32 %v183, 1.442695
      %v185 = vpow.pop %v184
      %v186 = vmul.f32 %v185, 22.803831
      %v187 = vadd.f32 %v186, 1.0
      %v188 = vmul.f32 %v185, %v185
      %v189 = vadd.f32 %v187, %v188
      %v190 = vrcp.pop %v189
      %v191 = vmul.f32 %v189, %v190
      %v192 = vsub.f32 2.0, %v191
      %v193 = vmul.f32 %v190, %v192
      %v194 = vmul.f32 %v185, 22.715958
      %v195 = vmul.f32 %v194, %v193
      %v196 = vadd.f32 %v56, %v195
      %v197 = vsub.f32 %v68, 53.125
      %v198 = vand.u32 2147483647, %v197
      %v199 = vsub.f32 0.0, %v198
      %v200 = vmul.f32 %v199, 1.442695
      %v201 = vpow.pop %v200
      %v202 = vmul.f32 %v201, 22.803831
      %v203 = vadd.f32 %v202, 1.0
      %v204 = vmul.f32 %v201, %v201
      %v205 = vadd.f32 %v203, %v204
      %v206 = vrcp.pop %v205
      %v207 = vmul.f32 %v205, %v206
      %v208 = vsub.f32 2.0, %v207
      %v209 = vmul.f32 %v206, %v208
      %v210 = vmul.f32 %v201, 22.715958
      %v211 = vmul.f32 %v210, %v209
      %v212 = vadd.f32 %v57, %v211
      %v213 = vsub.f32 %v68, 59.375
      %v214 = vand.u32 2147483647, %v213
      %v215 = vsub.f32 0.0, %v214
      %v216 = vmul.f32 %v215, 1.442695
      %v217 = vpow.pop %v216
      %v218 = vmul.f32 %v217, 22.803831
      %v219 = vadd.f32 %v218, 1.0
      %v220 = vmul.f32 %v217, %v217
      %v221 = vadd.f32 %v219, %v220
      %v222 = vrcp.pop %v221
      %v223 = vmul.f32 %v221, %v222
      %v224 = vsub.f32 2.0, %v223
      %v225 = vmul.f32 %v222, %v224
      %v226 = vmul.f32 %v217, 22.715958
      %v227 = vmul.f32 %v226, %v225
      %v228 = vadd.f32 %v58, %v227
      %v229 = vsub.f32 %v68, 65.625
      %v230 = vand.u32 2147483647, %v229
      %v231 = vsub.f32 0.0, %v230
      %v232 = vmul.f32 %v231, 1.442695
      %v233 = vpow.pop %v232
      %v234 = vmul.f32 %v233, 22.803831
      %v235 = vadd.f32 %v234, 1.0
      %v236 = vmul.f32 %v233, %v233
      %v237 = vadd.f32 %v235, %v236
      %v238 = vrcp.pop %v237
      %v239 = vmul.f32 %v237, %v238
      %v240 = vsub.f32 2.0, %v239
      %v241 = vmul.f32 %v238, %v240
      %v242 = vmul.f32 %v233, 22.715958
      %v243 = vmul.f32 %v242, %v241
      %v244 = vadd.f32 %v59, %v243
      %v245 = vsub.f32 %v68, 71.875
      %v246 = vand.u32 2147483647, %v245
      %v247 = vsub.f32 0.0, %v246
      %v248 = vmul.f32 %v247, 1.442695
      %v249 = vpow.pop %v248
      %v250 = vmul.f32 %v249, 22.803831
      %v251 = vadd.f32 %v250, 1.0
      %v252 = vmul.f32 %v249, %v249
      %v253 = vadd.f32 %v251, %v252
      %v254 = vrcp.pop %v253
      %v255 = vmul.f32 %v253, %v254
      %v256 = vsub.f32 2.0, %v255
      %v257 = vmul.f32 %v254, %v256
      %v258 = vmul.f32 %v249, 22.715958
      %v259 = vmul.f32 %v258, %v257
      %v260 = vadd.f32 %v60, %v259
      %v261 = vsub.f32 %v68, 78.125
      %v262 = vand.u32 2147483647, %v261
      %v263 = vsub.f32 0.0, %v262
      %v264 = vmul.f32 %v263, 1.442695
      %v265 = vpow.pop %v264
      %v266 = vmul.f32 %v265, 22.803831
      %v267 = vadd.f32 %v266, 1.0
      %v268 = vmul.f32 %v265, %v265
      %v269 = vadd.f32 %v267, %v268
      %v270 = vrcp.pop %v269
      %v271 = vmul.f32 %v269, %v270
      %v272 = vsub.f32 2.0, %v271
      %v273 = vmul.f32 %v270, %v272
      %v274 = vmul.f32 %v265, 22.715958
      %v275 = vmul.f32 %v274, %v273
      %v276 = vadd.f32 %v61, %v275
      %v277 = vsub.f32 %v68, 84.375
      %v278 = vand.u32 2147483647, %v277
      %v279 = vsub.f32 0.0, %v278
      %v280 = vmul.f32 %v279, 1.442695
      %v281 = vpow.pop %v280
      %v282 = vmul.f32 %v281, 22.803831
      %v283 = vadd.f32 %v282, 1.0
      %v284 = vmul.f32 %v281, %v281
      %v285 = vadd.f32 %v283, %v284
      %v286 = vrcp.pop %v285
      %v287 = vmul.f32 %v285, %v286
      %v288 = vsub.f32 2.0, %v287
      %v289 = vmul.f32 %v286, %v288
      %v290 = vmul.f32 %v281, 22.715958
      %v291 = vmul.f32 %v290, %v289
      %v292 = vadd.f32 %v62, %v291
      %v293 = vsub.f32 %v68, 90.625
      %v294 = vand.u32 2147483647, %v293
      %v295 = vsub.f32 0.0, %v294
      %v296 = vmul.f32 %v295, 1.442695
      %v297 = vpow.pop %v296
      %v298 = vmul.f32 %v297, 22.803831
      %v299 = vadd.f32 %v298, 1.0
      %v300 = vmul.f32 %v297, %v297
      %v301 = vadd.f32 %v299, %v300
      %v302 = vrcp.pop %v301
      %v303 = vmul.f32 %v301, %v302
      %v304 = vsub.f32 2.0, %v303
      %v305 = vmul.f32 %v302, %v304
      %v306 = vmul.f32 %v297, 22.715958
      %v307 = vmul.f32 %v306, %v305
      %v308 = vadd.f32 %v63, %v307
      %v309 = vsub.f32 %v68, 96.875
      %v310 = vand.u32 2147483647, %v309
      %v311 = vsub.f32 0.0, %v310
      %v312 = vmul.f32 %v311, 1.442695
      %v313 = vpow.pop %v312
      %v314 = vmul.f32 %v313, 22.803831
      %v315 = vadd.f32 %v314, 1.0
      %v316 = vmul.f32 %v313, %v313
      %v317 = vadd.f32 %v315, %v316
      %v318 = vrcp.pop %v317
      %v319 = vmul.f32 %v317, %v318
      %v320 = vsub.f32 2.0, %v319
      %v321 = vmul.f32 %v318, %v320
      %v322 = vmul.f32 %v313, 22.715958
      %v323 = vmul.f32 %v322, %v321
      %v324 = vadd.f32 %v64, %v323
    $region18: #{tpu_custom_call.1} parent=1 // loop_footer
      %s48 = sadd.s32 1, %s44
    $region19: #{tpu_custom_call.1} parent=1 // loop_footer_branch
      %43 = sbr.rel target = $region15
    $region20: #{tpu_custom_call.1} parent=1 // loop_exit
      _
    %v325 = vld [vmem:[#allocation5] sm:$0xff]
    %v326 = vadd.f32 %v325, %v49
    %327 = vst [vmem:[#allocation5] sm:$0xff] %v326
    %s328 = scalar_lea.vmem [#allocation5], 8
    %v329 = vld [vmem:[%s328] sm:$0xff]
    %v330 = vadd.f32 %v329, %v50
    %331 = vst [vmem:[%s328] sm:$0xff] %v330
    %s332 = scalar_lea.vmem [#allocation5], 16
    %v333 = vld [vmem:[%s332] sm:$0xff]
    %v334 = vadd.f32 %v333, %v51
    %335 = vst [vmem:[%s332] sm:$0xff] %v334
    %s336 = scalar_lea.vmem [#allocation5], 24
    %v337 = vld [vmem:[%s336] sm:$0xff]
    %v338 = vadd.f32 %v337, %v52
    %339 = vst [vmem:[%s336] sm:$0xff] %v338
    %s340 = scalar_lea.vmem [#allocation5], 32
    %v341 = vld [vmem:[%s340] sm:$0xff]
    %v342 = vadd.f32 %v341, %v53
    %343 = vst [vmem:[%s340] sm:$0xff] %v342
    %s344 = scalar_lea.vmem [#allocation5], 40
    %v345 = vld [vmem:[%s344] sm:$0xff]
    %v346 = vadd.f32 %v345, %v54
    %347 = vst [vmem:[%s344] sm:$0xff] %v346
    %s348 = scalar_lea.vmem [#allocation5], 48
    %v349 = vld [vmem:[%s348] sm:$0xff]
    %v350 = vadd.f32 %v349, %v55
    %351 = vst [vmem:[%s348] sm:$0xff] %v350
    %s352 = scalar_lea.vmem [#allocation5], 56
    %v353 = vld [vmem:[%s352] sm:$0xff]
    %v354 = vadd.f32 %v353, %v56
    %355 = vst [vmem:[%s352] sm:$0xff] %v354
    %s356 = scalar_lea.vmem [#allocation5], 64
    %v357 = vld [vmem:[%s356] sm:$0xff]
    %v358 = vadd.f32 %v357, %v57
    %359 = vst [vmem:[%s356] sm:$0xff] %v358
    %s360 = scalar_lea.vmem [#allocation5], 72
    %v361 = vld [vmem:[%s360] sm:$0xff]
    %v362 = vadd.f32 %v361, %v58
    %363 = vst [vmem:[%s360] sm:$0xff] %v362
    %s364 = scalar_lea.vmem [#allocation5], 80
    %v365 = vld [vmem:[%s364] sm:$0xff]
    %v366 = vadd.f32 %v365, %v59
    %367 = vst [vmem:[%s364] sm:$0xff] %v366
    %s368 = scalar_lea.vmem [#allocation5], 88
    %v369 = vld [vmem:[%s368] sm:$0xff]
    %v370 = vadd.f32 %v369, %v60
    %371 = vst [vmem:[%s368] sm:$0xff] %v370
    %s372 = scalar_lea.vmem [#allocation5], 96
    %v373 = vld [vmem:[%s372] sm:$0xff]
    %v374 = vadd.f32 %v373, %v61
    %375 = vst [vmem:[%s372] sm:$0xff] %v374
    %s376 = scalar_lea.vmem [#allocation5], 104
    %v377 = vld [vmem:[%s376] sm:$0xff]
    %v378 = vadd.f32 %v377, %v62
    %379 = vst [vmem:[%s376] sm:$0xff] %v378
    %s380 = scalar_lea.vmem [#allocation5], 112
    %v381 = vld [vmem:[%s380] sm:$0xff]
    %v382 = vadd.f32 %v381, %v63
    %383 = vst [vmem:[%s380] sm:$0xff] %v382
    %s384 = scalar_lea.vmem [#allocation5], 120
    %v385 = vld [vmem:[%s384] sm:$0xff]
    %v386 = vadd.f32 %v385, %v64
    %387 = vst [vmem:[%s384] sm:$0xff] %v386
    // Predicated region
    $region21: #{tpu_custom_call.1} parent=1 // pred_check
      _
    $region22: #{tpu_custom_call.1} parent=1 // pred_check_branch
      %389 = sbr.rel (0) target = $region24
    $region23: #{tpu_custom_call.1} parent=1 // pred_region
      %s391 = ssub.s32 2048, 2048
      %392 = vsyncadd [#allocation4], %s391
      %s393 = sshll.u32 [#allocation5], 4
      %s394 = int_to_ptr.vmem [resolvable:$true] %s393
      %399 = dma.vmem_to_hbm [thread:$0]  %s394, 2048, %s1, [#allocation4], 128, 128, 8
    $region24: #{tpu_custom_call.1} parent=1 // pred_fallthru
      _
    // Predicated region
    $region25: #{tpu_custom_call.1} parent=1 // pred_check
      _
    $region26: #{tpu_custom_call.1} parent=1 // pred_check_branch
      %401 = sbr.rel (0) target = $region28
    $region27: #{tpu_custom_call.1} parent=1 // pred_region
      %402 = dma.done [#allocation4], 2048
    $region28: #{tpu_custom_call.1} parent=1 // pred_fallthru
      _
    %403 = vsyncpa [#allocation3], 1
    %404 = vsyncpa [#allocation4], 1

</llo_original>
